<compile_context>
chip_gen: v6e
topology: v6e:2x2x1
jax: 0.10.0
libtpu: 0.0.40
codegen_flags: <defaults>
</compile_context>

<pallas_src>
import functools

import jax
import jax.numpy as jnp
from jax.experimental import pallas as pl
from jax.experimental.pallas import tpu as pltpu

LN_EPS = 1e-5  # torch.nn.functional.layer_norm default


def _mlp_kernel(x_ref, w1_ref, b1_ref, w2_ref, b2_ref, o_ref):
    # x_ref: (TM, Cin) tile of rows; weights/biases are resident blocks.
    x = x_ref[...]

    # fc: (TM, Cin) @ (Cin, H) on the MXU, f32 accumulation; bias is (1, H).
    h = jnp.dot(x, w1_ref[...], preferred_element_type=jnp.float32) + b1_ref[...]

    # layer_norm over the hidden dim (biased variance, eps=1e-5, no affine), ReLU.
    mean = jnp.mean(h, axis=-1, keepdims=True)
    centered = h - mean
    var = jnp.mean(centered * centered, axis=-1, keepdims=True)
    h = jnp.maximum(centered * jax.lax.rsqrt(var + LN_EPS), 0.0)

    # fc2 (Cout == 1): VPU multiply + cross-lane (XLU) sum, plus SMEM scalar bias.
    y = jnp.sum(h * w2_ref[...], axis=-1, keepdims=True) + b2_ref[0, 0]
    o_ref[...] = y.astype(o_ref.dtype)


@functools.partial(jax.jit, static_argnames=("row_tile",))
def mlp_forward(x, w1, b1, w2, b2, *, row_tile=1024):
    """x: (bs, M, Cin) -> (bs, M, 1)."""
    bs, M, cin = x.shape
    hidden = w1.shape[1]
    cout = w2.shape[1]
    if cout != 1:
        raise NotImplementedError("Trajectory_Scoring MLP has output_channels == 1")

    n_rows = bs * M
    x2d = x.reshape(n_rows, cin)

    # Large row tiles amortize per-grid-step overhead; clamp (to a multiple of 8,
    # the sublane tile) for tiny inputs so a single small block covers everything.
    tile = min(row_tile, ((n_rows + 7) // 8) * 8)
    grid = (pl.cdiv(n_rows, tile),)

    b1_row = b1.reshape(1, hidden)      # lane-major bias, broadcasts against (TM, H)
    w2_row = w2.reshape(1, hidden)      # (H, 1) -> (1, H) row for the VPU reduction
    b2_scalar = b2.reshape(1, 1)        # scalar bias, lives in SMEM

    out2d = pl.pallas_call(
        _mlp_kernel,
        out_shape=jax.ShapeDtypeStruct((n_rows, 1), x.dtype),
        grid_spec=pltpu.PrefetchScalarGridSpec(
            num_scalar_prefetch=0,
            grid=grid,
            in_specs=[
                pl.BlockSpec((tile, cin), lambda i: (i, 0)),    # x row tile
                pl.BlockSpec((cin, hidden), lambda i: (0, 0)),  # W1 (resident)
                pl.BlockSpec((1, hidden), lambda i: (0, 0)),    # b1 (resident)
                pl.BlockSpec((1, hidden), lambda i: (0, 0)),    # w2 row (resident)
                pl.BlockSpec(memory_space=pltpu.MemorySpace.SMEM),  # b2 scalar
            ],
            out_specs=pl.BlockSpec((tile, 1), lambda i: (i, 0)),
        ),
        compiler_params=pltpu.CompilerParams(
            dimension_semantics=("parallel",),  # shards across TCs on v7x
        ),
    )(x2d, w1, b1_row, w2_row, b2_scalar)

    return out2d.reshape(bs, M, 1)


def init_params(key, input_channels=102, hidden_channels=64, output_channels=1):
    """Deterministic synthetic parameters (shapes are nn.Linear weights transposed)."""
    k1, k2, k3, k4 = jax.random.split(key, 4)
    s1 = 1.0 / jnp.sqrt(jnp.float32(input_channels))
    s2 = 1.0 / jnp.sqrt(jnp.float32(hidden_channels))
    w1 = jax.random.uniform(k1, (input_channels, hidden_channels), jnp.float32, -s1, s1)
    b1 = jax.random.uniform(k2, (hidden_channels,), jnp.float32, -s1, s1)
    w2 = jax.random.uniform(k3, (hidden_channels, output_channels), jnp.float32, -s2, s2)
    b2 = jax.random.uniform(k4, (output_channels,), jnp.float32, -s2, s2)
    return w1, b1, w2, b2


def mlp_reference(x, w1, b1, w2, b2):
    """Plain-JAX reference for correctness check."""
    h = x @ w1 + b1
    mean = jnp.mean(h, axis=-1, keepdims=True)
    var = jnp.mean((h - mean) ** 2, axis=-1, keepdims=True)
    h = jnp.maximum((h - mean) * jax.lax.rsqrt(var + LN_EPS), 0.0)
    # Cout == 1: evaluate fc2 as an exact f32 multiply+sum (same math as h @ w2 + b2).
    return jnp.sum(h * w2[:, 0], axis=-1, keepdims=True) + b2


if __name__ == "__main__":
    key = jax.random.PRNGKey(0)
    k_x, k_p, k_x2 = jax.random.split(key, 3)

    input_channels, hidden_channels, output_channels = 102, 64, 1
    w1, b1, w2, b2 = init_params(k_p, input_channels, hidden_channels, output_channels)

    # Small case from the module spec: (bs, M, Cin) -> (bs, M, 1); single grid step.
    bs, M = 2, 8
    x = jax.random.normal(k_x, (bs, M, input_channels), dtype=jnp.float32)
    out = jax.block_until_ready(mlp_forward(x, w1, b1, w2, b2))
    ref = mlp_reference(x, w1, b1, w2, b2)
    assert out.shape == (bs, M, output_channels), out.shape
    assert jnp.allclose(out, ref, atol=1e-4, rtol=1e-4), float(jnp.max(jnp.abs(out - ref)))

    # Multi-step grid with a ragged last block (no host-side padding of x).
    bs2, M2 = 3, 343  # 1029 rows: 2 grid steps of 1024, last block mostly out-of-bounds
    x2 = jax.random.normal(k_x2, (bs2, M2, input_channels), dtype=jnp.float32)
    out2 = jax.block_until_ready(mlp_forward(x2, w1, b1, w2, b2))
    ref2 = mlp_reference(x2, w1, b1, w2, b2)
    assert out2.shape == (bs2, M2, output_channels), out2.shape
    assert jnp.allclose(out2, ref2, atol=1e-4, rtol=1e-4), float(jnp.max(jnp.abs(out2 - ref2)))

    print("KERNEL_OK")
</pallas_src>

<mosaic_0001>
module attributes {stable_mosaic.version = 11 : i64} {
  func.func @_mlp_kernel(%arg0: i32, %arg1: memref<16x102xf32, #tpu.memory_space<vmem>>, %arg2: memref<102x64xf32, #tpu.memory_space<vmem>>, %arg3: memref<1x64xf32, #tpu.memory_space<vmem>>, %arg4: memref<1x64xf32, #tpu.memory_space<vmem>>, %arg5: memref<1x1xf32, #tpu.memory_space<smem>>, %arg6: memref<16x1xf32, #tpu.memory_space<vmem>>) attributes {dimension_semantics = [#tpu.dimension_semantics<parallel>], iteration_bounds = array<i64: 1>, scalar_prefetch = 0 : i64, scratch_operands = 0 : i64, tpu.core_type = #tpu.core_type<tc>, window_params = [{transform_indices = @transform_0, window_bounds = array<i64: 16, 102>}, {pipeline_mode = #tpu.pipeline_mode<synchronous>, transform_indices = @transform_1, window_bounds = array<i64: 102, 64>}, {pipeline_mode = #tpu.pipeline_mode<synchronous>, transform_indices = @transform_2, window_bounds = array<i64: 1, 64>}, {pipeline_mode = #tpu.pipeline_mode<synchronous>, transform_indices = @transform_3, window_bounds = array<i64: 1, 64>}, {transform_indices = @transform_4, window_bounds = array<i64: 1, 1>}, {transform_indices = @transform_5, window_bounds = array<i64: 16, 1>}]} {
    %c0 = arith.constant 0 : index
    %c0_0 = arith.constant 0 : index
    %0 = vector.load %arg1[%c0, %c0_0] : memref<16x102xf32, #tpu.memory_space<vmem>>, vector<16x102xf32>
    %c0_1 = arith.constant 0 : index
    %c0_2 = arith.constant 0 : index
    %1 = vector.load %arg2[%c0_1, %c0_2] : memref<102x64xf32, #tpu.memory_space<vmem>>, vector<102x64xf32>
    %cst = arith.constant dense<0.000000e+00> : vector<16x64xf32>
    %2 = tpu.matmul %0, %1, %cst {dimension_numbers = #tpu.dot_dimension_numbers<[1], [0], [0], [1], [0, 0, 1, 1], [], []>} : vector<16x102xf32>, vector<102x64xf32>, vector<16x64xf32> -> vector<16x64xf32>
    %c0_3 = arith.constant 0 : index
    %c0_4 = arith.constant 0 : index
    %3 = vector.load %arg3[%c0_3, %c0_4] : memref<1x64xf32, #tpu.memory_space<vmem>>, vector<1x64xf32>
    %4 = vector.broadcast %3 : vector<1x64xf32> to vector<16x64xf32>
    %5 = arith.addf %2, %4 : vector<16x64xf32>
    %cst_5 = arith.constant dense<0.000000e+00> : vector<16xf32>
    %6 = vector.multi_reduction <add>, %5, %cst_5 [1] : vector<16x64xf32> to vector<16xf32>
    %7 = vector.shape_cast %6 : vector<16xf32> to vector<16x1xf32>
    %cst_6 = arith.constant 6.400000e+01 : f32
    %8 = vector.broadcast %cst_6 : f32 to vector<16x1xf32>
    %9 = arith.divf %7, %8 : vector<16x1xf32>
    %10 = vector.broadcast %9 : vector<16x1xf32> to vector<16x64xf32>
    %11 = arith.subf %5, %10 : vector<16x64xf32>
    %12 = arith.mulf %11, %11 : vector<16x64xf32>
    %cst_7 = arith.constant dense<0.000000e+00> : vector<16xf32>
    %13 = vector.multi_reduction <add>, %12, %cst_7 [1] : vector<16x64xf32> to vector<16xf32>
    %14 = vector.shape_cast %13 : vector<16xf32> to vector<16x1xf32>
    %cst_8 = arith.constant 6.400000e+01 : f32
    %15 = vector.broadcast %cst_8 : f32 to vector<16x1xf32>
    %16 = arith.divf %14, %15 : vector<16x1xf32>
    %cst_9 = arith.constant 9.99999974E-6 : f32
    %17 = vector.broadcast %cst_9 : f32 to vector<16x1xf32>
    %18 = arith.addf %16, %17 : vector<16x1xf32>
    %19 = math.rsqrt %18 : vector<16x1xf32>
    %20 = vector.broadcast %19 : vector<16x1xf32> to vector<16x64xf32>
    %21 = arith.mulf %11, %20 : vector<16x64xf32>
    %cst_10 = arith.constant 0.000000e+00 : f32
    %22 = vector.broadcast %cst_10 : f32 to vector<16x64xf32>
    %23 = arith.maximumf %21, %22 : vector<16x64xf32>
    %c0_11 = arith.constant 0 : index
    %c0_12 = arith.constant 0 : index
    %24 = vector.load %arg4[%c0_11, %c0_12] : memref<1x64xf32, #tpu.memory_space<vmem>>, vector<1x64xf32>
    %25 = vector.broadcast %24 : vector<1x64xf32> to vector<16x64xf32>
    %26 = arith.mulf %23, %25 : vector<16x64xf32>
    %cst_13 = arith.constant dense<0.000000e+00> : vector<16xf32>
    %27 = vector.multi_reduction <add>, %26, %cst_13 [1] : vector<16x64xf32> to vector<16xf32>
    %28 = vector.shape_cast %27 : vector<16xf32> to vector<16x1xf32>
    %c0_14 = arith.constant 0 : index
    %c0_15 = arith.constant 0 : index
    %29 = memref.load %arg5[%c0_14, %c0_15] : memref<1x1xf32, #tpu.memory_space<smem>>
    %30 = vector.broadcast %29 : f32 to vector<16x1xf32>
    %31 = arith.addf %28, %30 : vector<16x1xf32>
    %c0_16 = arith.constant 0 : index
    %c0_17 = arith.constant 0 : index
    %32 = vector.load %arg6[%c0_16, %c0_17] : memref<16x1xf32, #tpu.memory_space<vmem>>, vector<16x1xf32>
    tpu.vector_store %arg6[%c0_16, %c0_17], %31 {strides = array<i32>} : memref<16x1xf32, #tpu.memory_space<vmem>>, vector<16x1xf32>,
    return
  }
  func.func @transform_0(%arg0: i32) -> (i32, i32) {
    %c0_i32 = arith.constant 0 : i32
    %c0_i32_0 = arith.constant 0 : i32
    return %arg0, %c0_i32 : i32, i32
  }
  func.func @transform_1(%arg0: i32) -> (i32, i32) {
    %c0_i32 = arith.constant 0 : i32
    %c0_i32_0 = arith.constant 0 : i32
    %c0_i32_1 = arith.constant 0 : i32
    return %c0_i32, %c0_i32_0 : i32, i32
  }
  func.func @transform_2(%arg0: i32) -> (i32, i32) {
    %c0_i32 = arith.constant 0 : i32
    %c0_i32_0 = arith.constant 0 : i32
    %c0_i32_1 = arith.constant 0 : i32
    return %c0_i32, %c0_i32_0 : i32, i32
  }
  func.func @transform_3(%arg0: i32) -> (i32, i32) {
    %c0_i32 = arith.constant 0 : i32
    %c0_i32_0 = arith.constant 0 : i32
    %c0_i32_1 = arith.constant 0 : i32
    return %c0_i32, %c0_i32_0 : i32, i32
  }
  func.func @transform_4(%arg0: i32) -> (i32, i32) {
    %c0_i32 = arith.constant 0 : i32
    %c0_i32_0 = arith.constant 0 : i32
    %c0_i32_1 = arith.constant 0 : i32
    return %c0_i32, %c0_i32_0 : i32, i32
  }
  func.func @transform_5(%arg0: i32) -> (i32, i32) {
    %c0_i32 = arith.constant 0 : i32
    %c0_i32_0 = arith.constant 0 : i32
    return %arg0, %c0_i32 : i32, i32
  }
}

</mosaic_0001>

<llo_original>
// kernel: mlp_forward.1
$region0: #{mlp_forward.1}
  #allocation0 [shape = 'u32[]', space=smem, size = 0x4, offset = 0x4, fixed_abs, tag = 'smem constant byte address 0x4 - core index']
  #allocation1 [shape = 'u32[144,128]{1,0:T(1,128)}', space=vmem, size = 0x12000, scoped, tag = 'internal scratch']
  #allocation2 [shape = 'f32[1,1]{1,0:T(1,128)S(6)}', space=smem, size = 0x200, scoped, tag = 'scoped memory for mlp_forward.1']
  %s0 = inlined_call_operand.vmem [shape: f32[16,102], index: 0, kind: input, shape index: {}]
  %s1 = inlined_call_operand.vmem [shape: f32[102,64], index: 1, kind: input, shape index: {}]
  %s2 = inlined_call_operand.vmem [shape: f32[1,64], index: 2, kind: input, shape index: {}]
  %s3 = inlined_call_operand.vmem [shape: f32[1,64], index: 3, kind: input, shape index: {}]
  %s4 = inlined_call_operand.<no memory space> [shape: f32[1,1], index: 4, kind: input, shape index: {}]
  %s5 = inlined_call_operand.vmem [shape: f32[16,1], index: 5, kind: output, shape index: {}]
  %s6 = sld [smem:[#allocation0]]
  $region30: #{mlp_forward.1} parent=0
    _
  %s8 = ssub.s32 1, %s6
  %s9 = scalar_select 0, %s8, %s6
  %10 = sst [smem:[#allocation2]] %s4
  // Predicated region
  $region2: #{mlp_forward.1} parent=0 // pred_check
    _
  $region3: #{mlp_forward.1} parent=0 // pred_check_branch
    %12 = sbr.rel (0) target = $region5
  $region4: #{mlp_forward.1} parent=0 // pred_region
    _
  $region5: #{mlp_forward.1} parent=0 // pred_fallthru
    _
  // Predicated region
  $region6: #{mlp_forward.1} parent=0 // pred_check
    _
  $region7: #{mlp_forward.1} parent=0 // pred_check_branch
    %14 = sbr.rel (0) target = $region9
  $region8: #{mlp_forward.1} parent=0 // pred_region
    _
  $region9: #{mlp_forward.1} parent=0 // pred_fallthru
    _
  // Predicated region
  $region10: #{mlp_forward.1} parent=0 // pred_check
    _
  $region11: #{mlp_forward.1} parent=0 // pred_check_branch
    %16 = sbr.rel (0) target = $region13
  $region12: #{mlp_forward.1} parent=0 // pred_region
    _
  $region13: #{mlp_forward.1} parent=0 // pred_fallthru
    _
  // Predicated region
  $region14: #{mlp_forward.1} parent=0 // pred_check
    _
  $region15: #{mlp_forward.1} parent=0 // pred_check_branch
    %18 = sbr.rel (0) target = $region17
  $region16: #{mlp_forward.1} parent=0 // pred_region
    _
  $region17: #{mlp_forward.1} parent=0 // pred_fallthru
    _
  // Predicated region
  $region18: #{mlp_forward.1} parent=0 // pred_check
    _
  $region19: #{mlp_forward.1} parent=0 // pred_check_branch
    %20 = sbr.rel (0) target = $region21
  $region20: #{mlp_forward.1} parent=0 // pred_region
    _
  $region21: #{mlp_forward.1} parent=0 // pred_fallthru
    _
  %v21 = vld [vmem:[%s0] sm:$0xff]
  %v22 = vld [vmem:[%s0 + $0x8] sm:$0xff]
  %v23 = vld [vmem:[%s1] sm:$0xff]
  %v24 = vld [vmem:[%s1 + $0x8] sm:$0xff]
  %v25 = vld [vmem:[%s1 + $0x10] sm:$0xff]
  %v26 = vld [vmem:[%s1 + $0x18] sm:$0xff]
  %v27 = vld [vmem:[%s1 + $0x20] sm:$0xff]
  %v28 = vld [vmem:[%s1 + $0x28] sm:$0xff]
  %v29 = vld [vmem:[%s1 + $0x30] sm:$0xff]
  %v30 = vld [vmem:[%s1 + $0x38] sm:$0xff]
  %v31 = vld [vmem:[%s1 + $0x40] sm:$0xff]
  %v32 = vld [vmem:[%s1 + $0x48] sm:$0xff]
  %v33 = vld [vmem:[%s1 + $0x50] sm:$0xff]
  %v34 = vld [vmem:[%s1 + $0x58] sm:$0xff]
  %v35 = vld [vmem:[%s1 + $0x60] sm:$0x3f]
  %v36 = vld [vmem:[%s2] sm:$0x1]
  %v38 = vlaneseq
  %v39 = vshrl.u32 %v38, 7
  %v40 = vsub.s32 0, %v39
  %v41 = vrot.slane %v36, %v40
  %vm43 = vcmask 834560
  %v45 = vsel %vm43, %v21, 0
  %v48 = vsel %vm43, %v22, 0
  %vm50 = vcmask 1045504
  %v52 = vsel %vm50, %v35, 0
  %54 = vmatprep.subr.mxu0 0.0
  %55 = vmatpush1.msra.mxu0 0.0
  %56 = vmatprep.subr.mxu0 0.0
  %57 = vmatpush1.msra.mxu0 0.0
  %58 = vmatprep.subr.mxu0 0.0
  %59 = vmatpush1.msra.mxu0 0.0
  %60 = vmatprep.subr.mxu0 0.0
  %61 = vmatpush1.msra.mxu0 %v52
  %62 = vmatprep.subr.mxu0 0.0
  %63 = vmatpush1.msra.mxu0 %v34
  %64 = vmatprep.subr.mxu0 0.0
  %65 = vmatpush1.msra.mxu0 %v33
  %66 = vmatprep.subr.mxu0 0.0
  %67 = vmatpush1.msra.mxu0 %v32
  %68 = vmatprep.subr.mxu0 0.0
  %69 = vmatpush1.msra.mxu0 %v31
  %70 = vmatprep.subr.mxu0 0.0
  %71 = vmatpush1.msra.mxu0 %v30
  %72 = vmatprep.subr.mxu0 0.0
  %73 = vmatpush1.msra.mxu0 %v29
  %74 = vmatprep.subr.mxu0 0.0
  %75 = vmatpush1.msra.mxu0 %v28
  %76 = vmatprep.subr.mxu0 0.0
  %77 = vmatpush1.msra.mxu0 %v27
  %78 = vmatprep.subr.mxu0 0.0
  %79 = vmatpush1.msra.mxu0 %v26
  %80 = vmatprep.subr.mxu0 0.0
  %81 = vmatpush1.msra.mxu0 %v25
  %82 = vmatprep.subr.mxu0 0.0
  %83 = vmatpush1.msra.mxu0 %v24
  %84 = vmatprep.subr.mxu0 0.0
  %85 = vmatpush1.msra.mxu0 %v23
  %86 = vmatprep.subr.mxu0 0.0
  %87 = vmatpush2.msra.mxu0 0.0
  %88 = vmatprep.subr.mxu0 0.0
  %89 = vmatpush2.msra.mxu0 0.0
  %90 = vmatprep.subr.mxu0 0.0
  %91 = vmatpush2.msra.mxu0 0.0
  %92 = vmatprep.subr.mxu0 0.0
  %93 = vmatpush2.msra.mxu0 0.0
  %94 = vmatprep.subr.mxu0 0.0
  %95 = vmatpush2.msra.mxu0 0.0
  %96 = vmatprep.subr.mxu0 0.0
  %97 = vmatpush2.msra.mxu0 0.0
  %98 = vmatprep.subr.mxu0 0.0
  %99 = vmatpush2.msra.mxu0 0.0
  %100 = vmatprep.subr.mxu0 0.0
  %101 = vmatpush2.msra.mxu0 0.0
  %102 = vmatprep.subr.mxu0 0.0
  %103 = vmatpush2.msra.mxu0 0.0
  %104 = vmatprep.subr.mxu0 0.0
  %105 = vmatpush2.msra.mxu0 0.0
  %106 = vmatprep.subr.mxu0 0.0
  %107 = vmatpush2.msra.mxu0 0.0
  %108 = vmatprep.subr.mxu0 0.0
  %109 = vmatpush2.msra.mxu0 0.0
  %110 = vmatprep.subr.mxu0 0.0
  %111 = vmatpush2.msra.mxu0 0.0
  %112 = vmatprep.subr.mxu0 0.0
  %113 = vmatpush2.msra.mxu0 0.0
  %114 = vmatprep.subr.mxu0 0.0
  %115 = vmatpush2.msra.mxu0 0.0
  %116 = vmatprep.subr.mxu0 0.0
  %117 = vmatpush2.msra.mxu0 0.0
  %118 = vmatprep.mubr.f32.mxu0 0.0
  %119 = vmatmul.mubr.f32.gmra.mxu0 %v45
  %v120 = vpop.f32.mrf.mxu0
  %v121 = vadd.f32 %v41, %v120
  %v122 = vpop.f32.mrf.mxu0
  %123 = vmatprep.mubr.f32.mxu0 0.0
  %124 = vmatmul.mubr.f32.gmra.mxu0 %v48
  %v125 = vpop.f32.mrf.mxu0
  %v126 = vadd.f32 %v41, %v125
  %v127 = vpop.f32.mrf.mxu0
  %128 = vdwg.mxu0
  %vm129 = vcmask 523264
  %v130 = vsel %vm129, %v121, 0.0
  %131 = vadd.xlane.f32.xlu0 %v130
  %v132 = vpop.xlane.xlu0 %131
  %v133 = vsel %vm129, %v126, 0.0
  %134 = vadd.xlane.f32.xlu0 %v133
  %v135 = vpop.xlane.xlu0 %134
  %v136 = vrcp.pop 64.0
  %v137 = vmul.f32 %v132, %v136
  %v138 = vmul.f32 %v135, %v136
  %v139 = vsub.f32 %v121, %v137
  %v140 = vsub.f32 %v126, %v138
  %v141 = vmul.f32 %v139, %v139
  %v142 = vmul.f32 %v140, %v140
  %v143 = vsel %vm129, %v141, 0.0
  %144 = vadd.xlane.f32.xlu0 %v143
  %v145 = vpop.xlane.xlu0 %144
  %v146 = vsel %vm129, %v142, 0.0
  %147 = vadd.xlane.f32.xlu0 %v146
  %v148 = vpop.xlane.xlu0 %147
  %v149 = vmul.f32 %v145, %v136
  %v150 = vmul.f32 %v148, %v136
  %v151 = vadd.f32 %v149, 1e-05
  %v152 = vadd.f32 %v150, 1e-05
  %v153 = vrsqrt.pop %v151
  %v154 = vrsqrt.pop %v152
  %v155 = vmul.f32 %v139, %v153
  %v156 = vmul.f32 %v140, %v154
  %v157 = vmax.f32 %v155, 0.0
  %v158 = vmax.f32 %v156, 0.0
  %v159 = vld [vmem:[%s3] sm:$0x1]
  %v161 = vlaneseq
  %v162 = vshrl.u32 %v161, 7
  %v163 = vsub.s32 0, %v162
  %v164 = vrot.slane %v159, %v163
  %v166 = vmul.f32 %v157, %v164
  %v167 = vmul.f32 %v158, %v164
  %v168 = vsel %vm129, %v166, 0.0
  %169 = vadd.xlane.f32.xlu0 %v168
  %v170 = vpop.xlane.xlu0 %169
  %v171 = vsel %vm129, %v167, 0.0
  %172 = vadd.xlane.f32.xlu0 %v171
  %v173 = vpop.xlane.xlu0 %172
  %s174 = sld [smem:[#allocation2]]
  %v175 = vstv %s174
  %v176 = vadd.f32 %v170, %v175
  %v177 = vadd.f32 %v173, %v175
  %vm178 = vcmask 7168
  %179 = vst.msk [vmem:[%s5] sm:$0xff] %vm178, %v176
  %180 = vst.msk [vmem:[%s5 + $0x8] sm:$0xff] %vm178, %v177
  // Predicated region
  $region22: #{mlp_forward.1} parent=0 // pred_check
    _
  $region23: #{mlp_forward.1} parent=0 // pred_check_branch
    %182 = sbr.rel (0) target = $region25
  $region24: #{mlp_forward.1} parent=0 // pred_region
    _
  $region25: #{mlp_forward.1} parent=0 // pred_fallthru
    _
  // Predicated region
  $region26: #{mlp_forward.1} parent=0 // pred_check
    _
  $region27: #{mlp_forward.1} parent=0 // pred_check_branch
    %184 = sbr.rel (0) target = $region29
  $region28: #{mlp_forward.1} parent=0 // pred_region
    _
  $region29: #{mlp_forward.1} parent=0 // pred_fallthru
    _

</llo_original>
